<compile_context>
chip_gen: v6e
topology: v6e:2x2x1
jax: 0.10.0
libtpu: 0.0.40
codegen_flags: <defaults>
</compile_context>

<pallas_src>
import jax
import jax.numpy as jnp
from jax.experimental import pallas as pl
from jax.experimental.pallas import tpu as pltpu


def _rnn_ns_kernel(x_ref, h_ref,
                   w1_ref, b1_ref,
                   wg_ref, bg_ref,
                   w2_ref, b2_ref,
                   q_ref, hout_ref):
    """All agents fused via block-diagonal weights.

    x_ref:  (B, n_agents*D)        h_ref:  (B, n_agents*H)
    w1_ref: (nD, nH)               b1_ref: (1, nH)
    wg_ref: (2, nH, 4*nH)  [0]=y-path, [1]=h-path, columns [r|z|gi_n|gh_n]
    bg_ref: (1, 4*nH)      [b_ir+b_hr | b_iz+b_hz | b_in | b_hn]
    w2_ref: (nH, nA)               b2_ref: (1, nA)
    q_ref:  (B, nA)                hout_ref: (B, nH)
    """
    nH = h_ref.shape[-1]

    def dot(a, b):
        return jnp.dot(a, b, preferred_element_type=jnp.float32)

    x = x_ref[...]                         # (B, nD)
    h = h_ref[...]                         # (B, nH) -- read before aliased store

    # fc1 + ReLU, all agents in one block-diagonal matmul.
    y = jnp.maximum(dot(x, w1_ref[...]) + b1_ref[...], 0.0)     # (B, nH)

    # Fused GRU: two matmuls produce [r_pre | z_pre | gi_n | gh_n] in one slab.
    g = dot(y, wg_ref[0]) + dot(h, wg_ref[1]) + bg_ref[...]      # (B, 4nH)
    r = jax.nn.sigmoid(g[:, 0:nH])
    z = jax.nn.sigmoid(g[:, nH:2 * nH])
    n = jnp.tanh(g[:, 2 * nH:3 * nH] + r * g[:, 3 * nH:4 * nH])
    h_new = (1.0 - z) * n + z * h                                # (B, nH)

    # fc2, all agents in one block-diagonal matmul.
    q = dot(h_new, w2_ref[...]) + b2_ref[...]                    # (B, nA)

    q_ref[...] = q.astype(q_ref.dtype)
    hout_ref[...] = h_new.astype(hout_ref.dtype)


def _block_diag_t(w):
    """(n_agents, out_dim, in_dim) -> block-diag of w[a].T: (n*in, n*out)."""
    n, out_dim, in_dim = w.shape
    bd = jnp.zeros((n * in_dim, n * out_dim), jnp.float32)
    for a in range(n):
        bd = bd.at[a * in_dim:(a + 1) * in_dim,
                   a * out_dim:(a + 1) * out_dim].set(w[a].T)
    return bd


def prepare_params(params):
    """One-time re-layout of RNNNSAgent params (call at init, NOT per forward)."""
    n_agents, _, _ = params["w1"].shape
    H = params["b1"].shape[-1]
    A = params["b2"].shape[-1]
    nH = n_agents * H

    w_ih, w_hh = params["w_ih"], params["w_hh"]
    b_ih, b_hh = params["b_ih"], params["b_hh"]

    w_ir, w_iz, w_in = w_ih[:, 0:H], w_ih[:, H:2 * H], w_ih[:, 2 * H:3 * H]
    w_hr, w_hz, w_hn = w_hh[:, 0:H], w_hh[:, H:2 * H], w_hh[:, 2 * H:3 * H]

    zeros = jnp.zeros((nH, nH), jnp.float32)
    w_gy = jnp.concatenate([_block_diag_t(w_ir), _block_diag_t(w_iz),
                            _block_diag_t(w_in), zeros], axis=1)        # (nH, 4nH)
    w_gh = jnp.concatenate([_block_diag_t(w_hr), _block_diag_t(w_hz),
                            zeros, _block_diag_t(w_hn)], axis=1)        # (nH, 4nH)
    w_g = jnp.stack([w_gy, w_gh], axis=0)                               # (2, nH, 4nH)

    b_r = (b_ih[:, 0:H] + b_hh[:, 0:H]).reshape(nH)
    b_z = (b_ih[:, H:2 * H] + b_hh[:, H:2 * H]).reshape(nH)
    b_in = b_ih[:, 2 * H:3 * H].reshape(nH)
    b_hn = b_hh[:, 2 * H:3 * H].reshape(nH)
    b_g = jnp.concatenate([b_r, b_z, b_in, b_hn])[None, :]              # (1, 4nH)

    return {
        "w1_bd": _block_diag_t(params["w1"]),            # (nD, nH)
        "b1": params["b1"].reshape(1, nH),
        "w_g": w_g,
        "b_g": b_g,
        "w2_bd": _block_diag_t(params["w2"]),            # (nH, nA)
        "b2": params["b2"].reshape(1, n_agents * A),
    }


@jax.jit
def rnn_ns_forward(inputs, hidden_state, prepared):
    """RNNNSAgent.forward, batched (non-image) branch.

    inputs:       (B * n_agents, D)   float32  (agent index fastest)
    hidden_state: (B, n_agents, H)    float32
    prepared:     output of prepare_params()
    returns q:    (B * n_agents, A),  h: (B, n_agents, H)
    """
    _, D = inputs.shape
    B, n_agents, H = hidden_state.shape
    nH = n_agents * H
    nA = prepared["w2_bd"].shape[-1]
    A = nA // n_agents

    x = inputs.reshape(B, n_agents * D)         # free reshape, no relayout
    h = hidden_state.reshape(B, nH)             # free reshape

    args = (x, h,
            prepared["w1_bd"], prepared["b1"],
            prepared["w_g"], prepared["b_g"],
            prepared["w2_bd"], prepared["b2"])

    vmem_spec = pl.BlockSpec(memory_space=pltpu.MemorySpace.VMEM)
    q_slab, h_slab = pl.pallas_call(
        _rnn_ns_kernel,
        out_shape=(jax.ShapeDtypeStruct((B, nA), jnp.float32),
                   jax.ShapeDtypeStruct((B, nH), jnp.float32)),
        in_specs=[vmem_spec] * len(args),
        out_specs=(vmem_spec, vmem_spec),
        input_output_aliases={1: 1},            # hidden_state buffer -> h_out
    )(*args)

    q_out = q_slab.reshape(B * n_agents, A)     # free reshape (agent-major cols)
    h_out = h_slab.reshape(B, n_agents, H)      # free reshape
    return q_out, h_out


def _reference_forward(inputs, hidden_state, params):
    """Pure-JAX reference (mirrors PyTorch RNNNSAgent + RNNAgent/GRUCell)."""
    B_na, D = inputs.shape
    _, n_agents, H = hidden_state.shape
    B = B_na // n_agents
    x = inputs.reshape(B, n_agents, D)
    qs, hs = [], []
    for i in range(n_agents):
        xi = x[:, i]                           # (B, D)
        hi = hidden_state[:, i]                # (B, H)
        y = jnp.maximum(xi @ params["w1"][i].T + params["b1"][i], 0.0)
        gx = y @ params["w_ih"][i].T + params["b_ih"][i]
        gh = hi @ params["w_hh"][i].T + params["b_hh"][i]
        r = jax.nn.sigmoid(gx[:, 0:H] + gh[:, 0:H])
        z = jax.nn.sigmoid(gx[:, H:2 * H] + gh[:, H:2 * H])
        n = jnp.tanh(gx[:, 2 * H:] + r * gh[:, 2 * H:])
        h_new = (1.0 - z) * n + z * hi
        q = h_new @ params["w2"][i].T + params["b2"][i]
        qs.append(q[:, None, :])
        hs.append(h_new[:, None, :])
    q_cat = jnp.concatenate(qs, axis=-1).reshape(-1, qs[0].shape[-1])
    h_cat = jnp.concatenate(hs, axis=1)
    return q_cat, h_cat


def make_params(key, n_agents, input_dim, hidden_dim, n_actions):
    ks = jax.random.split(key, 8)
    s = 0.1
    return {
        "w1":   s * jax.random.normal(ks[0], (n_agents, hidden_dim, input_dim), jnp.float32),
        "b1":   s * jax.random.normal(ks[1], (n_agents, hidden_dim), jnp.float32),
        "w_ih": s * jax.random.normal(ks[2], (n_agents, 3 * hidden_dim, hidden_dim), jnp.float32),
        "b_ih": s * jax.random.normal(ks[3], (n_agents, 3 * hidden_dim), jnp.float32),
        "w_hh": s * jax.random.normal(ks[4], (n_agents, 3 * hidden_dim, hidden_dim), jnp.float32),
        "b_hh": s * jax.random.normal(ks[5], (n_agents, 3 * hidden_dim), jnp.float32),
        "w2":   s * jax.random.normal(ks[6], (n_agents, n_actions, hidden_dim), jnp.float32),
        "b2":   s * jax.random.normal(ks[7], (n_agents, n_actions), jnp.float32),
    }


if __name__ == "__main__":
    # TODO(synk): image-input path (per-agent CNN feature extractor) of
    # RNNNSAgent is not implemented; only the flat-feature branch is covered.
    n_agents, batch, input_dim, hidden_dim, n_actions = 3, 2, 16, 32, 8

    key = jax.random.PRNGKey(0)
    k_in, k_h, k_p = jax.random.split(key, 3)

    inputs = jax.random.normal(k_in, (batch * n_agents, input_dim), jnp.float32)
    hidden = jax.random.normal(k_h, (batch, n_agents, hidden_dim), jnp.float32)
    params = make_params(k_p, n_agents, input_dim, hidden_dim, n_actions)

    # One-time weight re-layout (block-diagonal + fused GRU), outside the
    # jitted forward path.
    prepared = prepare_params(params)
    prepared = jax.block_until_ready(prepared)

    q, h = rnn_ns_forward(inputs, hidden, prepared)
    q, h = jax.block_until_ready((q, h))

    q_ref, h_ref = _reference_forward(inputs, hidden, params)

    assert q.shape == (batch * n_agents, n_actions), q.shape
    assert h.shape == (batch, n_agents, hidden_dim), h.shape
    assert bool(jnp.all(jnp.isfinite(q))) and bool(jnp.all(jnp.isfinite(h)))
    assert jnp.allclose(q, q_ref, atol=1e-3, rtol=1e-3)
    assert jnp.allclose(h, h_ref, atol=1e-3, rtol=1e-3)

    print("KERNEL_OK")
</pallas_src>

<mosaic_0001>
module attributes {stable_mosaic.version = 11 : i64} {
  func.func @_rnn_ns_kernel(%arg0: memref<2x48xf32, #tpu.memory_space<vmem>>, %arg1: memref<2x96xf32, #tpu.memory_space<vmem>>, %arg2: memref<48x96xf32, #tpu.memory_space<vmem>>, %arg3: memref<1x96xf32, #tpu.memory_space<vmem>>, %arg4: memref<2x96x384xf32, #tpu.memory_space<vmem>>, %arg5: memref<1x384xf32, #tpu.memory_space<vmem>>, %arg6: memref<96x24xf32, #tpu.memory_space<vmem>>, %arg7: memref<1x24xf32, #tpu.memory_space<vmem>>, %arg8: memref<2x24xf32, #tpu.memory_space<vmem>>, %arg9: memref<2x96xf32, #tpu.memory_space<vmem>>) attributes {dimension_semantics = [], scalar_prefetch = 0 : i64, scratch_operands = 0 : i64, tpu.core_type = #tpu.core_type<tc>} {
    %c0 = arith.constant 0 : index
    %c0_0 = arith.constant 0 : index
    %0 = vector.load %arg0[%c0, %c0_0] : memref<2x48xf32, #tpu.memory_space<vmem>>, vector<2x48xf32>
    %c0_1 = arith.constant 0 : index
    %c0_2 = arith.constant 0 : index
    %1 = vector.load %arg1[%c0_1, %c0_2] : memref<2x96xf32, #tpu.memory_space<vmem>>, vector<2x96xf32>
    %c0_3 = arith.constant 0 : index
    %c0_4 = arith.constant 0 : index
    %2 = vector.load %arg2[%c0_3, %c0_4] : memref<48x96xf32, #tpu.memory_space<vmem>>, vector<48x96xf32>
    %cst = arith.constant dense<0.000000e+00> : vector<2x96xf32>
    %3 = tpu.matmul %0, %2, %cst {dimension_numbers = #tpu.dot_dimension_numbers<[1], [0], [0], [1], [0, 0, 1, 1], [], []>} : vector<2x48xf32>, vector<48x96xf32>, vector<2x96xf32> -> vector<2x96xf32>
    %c0_5 = arith.constant 0 : index
    %c0_6 = arith.constant 0 : index
    %4 = vector.load %arg3[%c0_5, %c0_6] : memref<1x96xf32, #tpu.memory_space<vmem>>, vector<1x96xf32>
    %5 = vector.broadcast %4 : vector<1x96xf32> to vector<2x96xf32>
    %6 = arith.addf %3, %5 : vector<2x96xf32>
    %cst_7 = arith.constant 0.000000e+00 : f32
    %7 = vector.broadcast %cst_7 : f32 to vector<2x96xf32>
    %8 = arith.maximumf %6, %7 : vector<2x96xf32>
    %c0_8 = arith.constant 0 : index
    %c0_9 = arith.constant 0 : index
    %c0_10 = arith.constant 0 : index
    %9 = vector.load %arg4[%c0_8, %c0_9, %c0_10] : memref<2x96x384xf32, #tpu.memory_space<vmem>>, vector<1x96x384xf32>
    %10 = vector.shape_cast %9 : vector<1x96x384xf32> to vector<96x384xf32>
    %cst_11 = arith.constant dense<0.000000e+00> : vector<2x384xf32>
    %11 = tpu.matmul %8, %10, %cst_11 {dimension_numbers = #tpu.dot_dimension_numbers<[1], [0], [0], [1], [0, 0, 1, 1], [], []>} : vector<2x96xf32>, vector<96x384xf32>, vector<2x384xf32> -> vector<2x384xf32>
    %c1 = arith.constant 1 : index
    %c0_12 = arith.constant 0 : index
    %c0_13 = arith.constant 0 : index
    %12 = vector.load %arg4[%c1, %c0_12, %c0_13] : memref<2x96x384xf32, #tpu.memory_space<vmem>>, vector<1x96x384xf32>
    %13 = vector.shape_cast %12 : vector<1x96x384xf32> to vector<96x384xf32>
    %cst_14 = arith.constant dense<0.000000e+00> : vector<2x384xf32>
    %14 = tpu.matmul %1, %13, %cst_14 {dimension_numbers = #tpu.dot_dimension_numbers<[1], [0], [0], [1], [0, 0, 1, 1], [], []>} : vector<2x96xf32>, vector<96x384xf32>, vector<2x384xf32> -> vector<2x384xf32>
    %15 = arith.addf %11, %14 : vector<2x384xf32>
    %c0_15 = arith.constant 0 : index
    %c0_16 = arith.constant 0 : index
    %16 = vector.load %arg5[%c0_15, %c0_16] : memref<1x384xf32, #tpu.memory_space<vmem>>, vector<1x384xf32>
    %17 = vector.broadcast %16 : vector<1x384xf32> to vector<2x384xf32>
    %18 = arith.addf %15, %17 : vector<2x384xf32>
    %19 = vector.extract_strided_slice %18 {offsets = [0, 0], sizes = [2, 96], strides = [1, 1]} : vector<2x384xf32> to vector<2x96xf32>
    %20 = arith.negf %19 : vector<2x96xf32>
    %21 = math.exp %20 : vector<2x96xf32>
    %cst_17 = arith.constant 1.000000e+00 : f32
    %22 = vector.broadcast %cst_17 : f32 to vector<2x96xf32>
    %23 = arith.addf %22, %21 : vector<2x96xf32>
    %24 = arith.divf %22, %23 : vector<2x96xf32>
    %25 = vector.extract_strided_slice %18 {offsets = [0, 96], sizes = [2, 96], strides = [1, 1]} : vector<2x384xf32> to vector<2x96xf32>
    %26 = arith.negf %25 : vector<2x96xf32>
    %27 = math.exp %26 : vector<2x96xf32>
    %cst_18 = arith.constant 1.000000e+00 : f32
    %28 = vector.broadcast %cst_18 : f32 to vector<2x96xf32>
    %29 = arith.addf %28, %27 : vector<2x96xf32>
    %30 = arith.divf %28, %29 : vector<2x96xf32>
    %31 = vector.extract_strided_slice %18 {offsets = [0, 192], sizes = [2, 96], strides = [1, 1]} : vector<2x384xf32> to vector<2x96xf32>
    %32 = vector.extract_strided_slice %18 {offsets = [0, 288], sizes = [2, 96], strides = [1, 1]} : vector<2x384xf32> to vector<2x96xf32>
    %33 = arith.mulf %24, %32 : vector<2x96xf32>
    %34 = arith.addf %31, %33 : vector<2x96xf32>
    %35 = math.tanh %34 : vector<2x96xf32>
    %cst_19 = arith.constant 1.000000e+00 : f32
    %36 = vector.broadcast %cst_19 : f32 to vector<2x96xf32>
    %37 = arith.subf %36, %30 : vector<2x96xf32>
    %38 = arith.mulf %37, %35 : vector<2x96xf32>
    %39 = arith.mulf %30, %1 : vector<2x96xf32>
    %40 = arith.addf %38, %39 : vector<2x96xf32>
    %c0_20 = arith.constant 0 : index
    %c0_21 = arith.constant 0 : index
    %41 = vector.load %arg6[%c0_20, %c0_21] : memref<96x24xf32, #tpu.memory_space<vmem>>, vector<96x24xf32>
    %cst_22 = arith.constant dense<0.000000e+00> : vector<2x24xf32>
    %42 = tpu.matmul %40, %41, %cst_22 {dimension_numbers = #tpu.dot_dimension_numbers<[1], [0], [0], [1], [0, 0, 1, 1], [], []>} : vector<2x96xf32>, vector<96x24xf32>, vector<2x24xf32> -> vector<2x24xf32>
    %c0_23 = arith.constant 0 : index
    %c0_24 = arith.constant 0 : index
    %43 = vector.load %arg7[%c0_23, %c0_24] : memref<1x24xf32, #tpu.memory_space<vmem>>, vector<1x24xf32>
    %44 = vector.broadcast %43 : vector<1x24xf32> to vector<2x24xf32>
    %45 = arith.addf %42, %44 : vector<2x24xf32>
    %c0_25 = arith.constant 0 : index
    %c0_26 = arith.constant 0 : index
    %46 = vector.load %arg8[%c0_25, %c0_26] : memref<2x24xf32, #tpu.memory_space<vmem>>, vector<2x24xf32>
    tpu.vector_store %arg8[%c0_25, %c0_26], %45 {strides = array<i32>} : memref<2x24xf32, #tpu.memory_space<vmem>>, vector<2x24xf32>,
    %c0_27 = arith.constant 0 : index
    %c0_28 = arith.constant 0 : index
    %47 = vector.load %arg9[%c0_27, %c0_28] : memref<2x96xf32, #tpu.memory_space<vmem>>, vector<2x96xf32>
    tpu.vector_store %arg9[%c0_27, %c0_28], %40 {strides = array<i32>} : memref<2x96xf32, #tpu.memory_space<vmem>>, vector<2x96xf32>,
    return
  }
}

</mosaic_0001>

<llo_original>
// kernel: rnn_ns_forward.1
$region0: #{rnn_ns_forward.1}
  #allocation0 [shape = 'u32[]', space=smem, size = 0x4, offset = 0x4, fixed_abs, tag = 'smem constant byte address 0x4 - core index']
  #allocation1 [shape = 'u32[144,128]{1,0:T(1,128)}', space=vmem, size = 0x12000, scoped, tag = 'internal scratch']
  %s0 = inlined_call_operand.vmem [shape: f32[2,48], index: 0, kind: input, shape index: {}]
  %s1 = inlined_call_operand.vmem [shape: f32[2,96], index: 1, kind: input, shape index: {}, may-alias: {1,9}]
  %s2 = inlined_call_operand.vmem [shape: f32[48,96], index: 2, kind: input, shape index: {}]
  %s3 = inlined_call_operand.vmem [shape: f32[1,96], index: 3, kind: input, shape index: {}]
  %s4 = inlined_call_operand.hbm [shape: f32[2,96,384], index: 4, kind: input, shape index: {}]
  %s5 = inlined_call_operand.vmem [shape: f32[1,384], index: 5, kind: input, shape index: {}]
  %s6 = inlined_call_operand.vmem [shape: f32[96,24], index: 6, kind: input, shape index: {}]
  %s7 = inlined_call_operand.vmem [shape: f32[1,24], index: 7, kind: input, shape index: {}]
  %s8 = inlined_call_operand.vmem [shape: f32[2,24], index: 8, kind: output, shape index: {0}]
  %s9 = inlined_call_operand.vmem [shape: f32[2,96], index: 9, kind: output, shape index: {1}, may-alias: {1,9}]
  %10 = xla_tuple %s8, %s9
  %s11 = sld [smem:[#allocation0]]
  $region54: #{rnn_ns_forward.1} parent=0
    _
  %s13 = ssub.s32 1, %s11
  %s14 = scalar_select 0, %s13, %s11
  $region1: #{rnn_ns_forward.1} parent=0
    #allocation2 [shape = 'u8[294912]{0}', space=vmem, size = 0x48000, scoped, tag = 'input window, operand 4, single buffered']
    #allocation3 [shape = 's32[1]{0}', space=sflag, size = 0x4, scoped, tag = 'scoped memory for rnn_ns_forward.1']
    %15 = vsyncpa [#allocation3], 0
    // Predicated region
    $region2: #{rnn_ns_forward.1} parent=1 // pred_check
      _
    $region3: #{rnn_ns_forward.1} parent=1 // pred_check_branch
      %17 = sbr.rel (0) target = $region5
    $region4: #{rnn_ns_forward.1} parent=1 // pred_region
      _
    $region5: #{rnn_ns_forward.1} parent=1 // pred_fallthru
      _
    // Predicated region
    $region6: #{rnn_ns_forward.1} parent=1 // pred_check
      _
    $region7: #{rnn_ns_forward.1} parent=1 // pred_check_branch
      %19 = sbr.rel (0) target = $region9
    $region8: #{rnn_ns_forward.1} parent=1 // pred_region
      _
    $region9: #{rnn_ns_forward.1} parent=1 // pred_fallthru
      _
    // Predicated region
    $region10: #{rnn_ns_forward.1} parent=1 // pred_check
      _
    $region11: #{rnn_ns_forward.1} parent=1 // pred_check_branch
      %21 = sbr.rel (0) target = $region13
    $region12: #{rnn_ns_forward.1} parent=1 // pred_region
      _
    $region13: #{rnn_ns_forward.1} parent=1 // pred_fallthru
      _
    // Predicated region
    $region14: #{rnn_ns_forward.1} parent=1 // pred_check
      _
    $region15: #{rnn_ns_forward.1} parent=1 // pred_check_branch
      %23 = sbr.rel (0) target = $region17
    $region16: #{rnn_ns_forward.1} parent=1 // pred_region
      _
    $region17: #{rnn_ns_forward.1} parent=1 // pred_fallthru
      _
    // Predicated region
    $region18: #{rnn_ns_forward.1} parent=1 // pred_check
      _
    $region19: #{rnn_ns_forward.1} parent=1 // pred_check_branch
      %25 = sbr.rel (0) target = $region21
    $region20: #{rnn_ns_forward.1} parent=1 // pred_region
      %s27 = ssub.s32 9216, 9216
      %28 = vsyncadd [#allocation3], %s27
      %s29 = sshll.u32 [#allocation2], 4
      %s30 = int_to_ptr.vmem [resolvable:$true] %s29
      %35 = dma.hbm_to_vmem [thread:$0]  %s4, 9216, %s30, [#allocation3], 384, 384, 24
    $region21: #{rnn_ns_forward.1} parent=1 // pred_fallthru
      _
    // Predicated region
    $region22: #{rnn_ns_forward.1} parent=1 // pred_check
      _
    $region23: #{rnn_ns_forward.1} parent=1 // pred_check_branch
      %37 = sbr.rel (0) target = $region25
    $region24: #{rnn_ns_forward.1} parent=1 // pred_region
      _
    $region25: #{rnn_ns_forward.1} parent=1 // pred_fallthru
      _
    // Predicated region
    $region26: #{rnn_ns_forward.1} parent=1 // pred_check
      _
    $region27: #{rnn_ns_forward.1} parent=1 // pred_check_branch
      %39 = sbr.rel (0) target = $region29
    $region28: #{rnn_ns_forward.1} parent=1 // pred_region
      _
    $region29: #{rnn_ns_forward.1} parent=1 // pred_fallthru
      _
    // Predicated region
    $region30: #{rnn_ns_forward.1} parent=1 // pred_check
      _
    $region31: #{rnn_ns_forward.1} parent=1 // pred_check_branch
      %41 = sbr.rel (0) target = $region33
    $region32: #{rnn_ns_forward.1} parent=1 // pred_region
      _
    $region33: #{rnn_ns_forward.1} parent=1 // pred_fallthru
      _
    // Predicated region
    $region34: #{rnn_ns_forward.1} parent=1 // pred_check
      _
    $region35: #{rnn_ns_forward.1} parent=1 // pred_check_branch
      %43 = sbr.rel (0) target = $region37
    $region36: #{rnn_ns_forward.1} parent=1 // pred_region
      %44 = dma.done [#allocation3], 9216
    $region37: #{rnn_ns_forward.1} parent=1 // pred_fallthru
      _
    %v45 = vld [vmem:[%s0] sm:$0x3]
    %v46 = vld [vmem:[%s1] sm:$0x3]
    %v47 = vld [vmem:[%s2] sm:$0xff]
    %v48 = vld [vmem:[%s2 + $0x8] sm:$0xff]
    %v49 = vld [vmem:[%s2 + $0x10] sm:$0xff]
    %v50 = vld [vmem:[%s2 + $0x18] sm:$0xff]
    %v51 = vld [vmem:[%s2 + $0x20] sm:$0xff]
    %v52 = vld [vmem:[%s2 + $0x28] sm:$0xff]
    %v53 = vld [vmem:[%s3] sm:$0x1]
    %v55 = vlaneseq
    %v56 = vshrl.u32 %v55, 7
    %v57 = vsub.s32 0, %v56
    %v58 = vrot.slane %v53, %v57
    %vm60 = vcmask 392192
    %v62 = vsel %vm60, %v45, 0
    %64 = vmatprep.subr.mxu0 0.0
    %65 = vmatpush1.msra.mxu0 0.0
    %66 = vmatprep.subr.mxu0 0.0
    %67 = vmatpush1.msra.mxu0 0.0
    %68 = vmatprep.subr.mxu0 0.0
    %69 = vmatpush1.msra.mxu0 0.0
    %70 = vmatprep.subr.mxu0 0.0
    %71 = vmatpush1.msra.mxu0 0.0
    %72 = vmatprep.subr.mxu0 0.0
    %73 = vmatpush1.msra.mxu0 0.0
    %74 = vmatprep.subr.mxu0 0.0
    %75 = vmatpush1.msra.mxu0 0.0
    %76 = vmatprep.subr.mxu0 0.0
    %77 = vmatpush1.msra.mxu0 0.0
    %78 = vmatprep.subr.mxu0 0.0
    %79 = vmatpush1.msra.mxu0 0.0
    %80 = vmatprep.subr.mxu0 0.0
    %81 = vmatpush1.msra.mxu0 0.0
    %82 = vmatprep.subr.mxu0 0.0
    %83 = vmatpush1.msra.mxu0 0.0
    %84 = vmatprep.subr.mxu0 0.0
    %85 = vmatpush1.msra.mxu0 %v52
    %86 = vmatprep.subr.mxu0 0.0
    %87 = vmatpush1.msra.mxu0 %v51
    %88 = vmatprep.subr.mxu0 0.0
    %89 = vmatpush1.msra.mxu0 %v50
    %90 = vmatprep.subr.mxu0 0.0
    %91 = vmatpush1.msra.mxu0 %v49
    %92 = vmatprep.subr.mxu0 0.0
    %93 = vmatpush1.msra.mxu0 %v48
    %94 = vmatprep.subr.mxu0 0.0
    %95 = vmatpush1.msra.mxu0 %v47
    %96 = vmatprep.subr.mxu0 0.0
    %97 = vmatpush2.msra.mxu0 0.0
    %98 = vmatprep.subr.mxu0 0.0
    %99 = vmatpush2.msra.mxu0 0.0
    %100 = vmatprep.subr.mxu0 0.0
    %101 = vmatpush2.msra.mxu0 0.0
    %102 = vmatprep.subr.mxu0 0.0
    %103 = vmatpush2.msra.mxu0 0.0
    %104 = vmatprep.subr.mxu0 0.0
    %105 = vmatpush2.msra.mxu0 0.0
    %106 = vmatprep.subr.mxu0 0.0
    %107 = vmatpush2.msra.mxu0 0.0
    %108 = vmatprep.subr.mxu0 0.0
    %109 = vmatpush2.msra.mxu0 0.0
    %110 = vmatprep.subr.mxu0 0.0
    %111 = vmatpush2.msra.mxu0 0.0
    %112 = vmatprep.subr.mxu0 0.0
    %113 = vmatpush2.msra.mxu0 0.0
    %114 = vmatprep.subr.mxu0 0.0
    %115 = vmatpush2.msra.mxu0 0.0
    %116 = vmatprep.subr.mxu0 0.0
    %117 = vmatpush2.msra.mxu0 0.0
    %118 = vmatprep.subr.mxu0 0.0
    %119 = vmatpush2.msra.mxu0 0.0
    %120 = vmatprep.subr.mxu0 0.0
    %121 = vmatpush2.msra.mxu0 0.0
    %122 = vmatprep.subr.mxu0 0.0
    %123 = vmatpush2.msra.mxu0 0.0
    %124 = vmatprep.subr.mxu0 0.0
    %125 = vmatpush2.msra.mxu0 0.0
    %126 = vmatprep.subr.mxu0 0.0
    %127 = vmatpush2.msra.mxu0 0.0
    %128 = vmatprep.mubr.f32.mxu0 0.0
    %129 = vmatmul.mubr.f32.gmra.mxu0 %v62
    %v130 = vpop.f32.mrf.mxu0
    %v131 = vadd.f32 %v58, %v130
    %v132 = vpop.f32.mrf.mxu0
    %133 = vdwg.mxu0
    %v134 = vmax.f32 %v131, 0.0
    %v135 = vld [vmem:[#allocation2] sm:$0xff]
    %v136 = vld [vmem:[#allocation2 + $0x8] sm:$0xff]
    %v137 = vld [vmem:[#allocation2 + $0x10] sm:$0xff]
    %v138 = vld [vmem:[#allocation2 + $0x18] sm:$0xff]
    %v139 = vld [vmem:[#allocation2 + $0x20] sm:$0xff]
    %v140 = vld [vmem:[#allocation2 + $0x28] sm:$0xff]
    %v141 = vld [vmem:[#allocation2 + $0x30] sm:$0xff]
    %v142 = vld [vmem:[#allocation2 + $0x38] sm:$0xff]
    %v143 = vld [vmem:[#allocation2 + $0x40] sm:$0xff]
    %v144 = vld [vmem:[#allocation2 + $0x48] sm:$0xff]
    %v145 = vld [vmem:[#allocation2 + $0x50] sm:$0xff]
    %v146 = vld [vmem:[#allocation2 + $0x58] sm:$0xff]
    %v147 = vld [vmem:[#allocation2 + $0x60] sm:$0xff]
    %v148 = vld [vmem:[#allocation2 + $0x68] sm:$0xff]
    %v149 = vld [vmem:[#allocation2 + $0x70] sm:$0xff]
    %v150 = vld [vmem:[#allocation2 + $0x78] sm:$0xff]
    %v151 = vld [vmem:[#allocation2 + $0x80] sm:$0xff]
    %v152 = vld [vmem:[#allocation2 + $0x88] sm:$0xff]
    %v153 = vld [vmem:[#allocation2 + $0x90] sm:$0xff]
    %v154 = vld [vmem:[#allocation2 + $0x98] sm:$0xff]
    %v155 = vld [vmem:[#allocation2 + $0xa0] sm:$0xff]
    %v156 = vld [vmem:[#allocation2 + $0xa8] sm:$0xff]
    %v157 = vld [vmem:[#allocation2 + $0xb0] sm:$0xff]
    %v158 = vld [vmem:[#allocation2 + $0xb8] sm:$0xff]
    %v159 = vld [vmem:[#allocation2 + $0xc0] sm:$0xff]
    %v160 = vld [vmem:[#allocation2 + $0xc8] sm:$0xff]
    %v161 = vld [vmem:[#allocation2 + $0xd0] sm:$0xff]
    %v162 = vld [vmem:[#allocation2 + $0xd8] sm:$0xff]
    %v163 = vld [vmem:[#allocation2 + $0xe0] sm:$0xff]
    %v164 = vld [vmem:[#allocation2 + $0xe8] sm:$0xff]
    %v165 = vld [vmem:[#allocation2 + $0xf0] sm:$0xff]
    %v166 = vld [vmem:[#allocation2 + $0xf8] sm:$0xff]
    %v167 = vld [vmem:[#allocation2 + $0x100] sm:$0xff]
    %v168 = vld [vmem:[#allocation2 + $0x108] sm:$0xff]
    %v169 = vld [vmem:[#allocation2 + $0x110] sm:$0xff]
    %v170 = vld [vmem:[#allocation2 + $0x118] sm:$0xff]
    %s171 = scalar_lea.vmem [#allocation2], 288
    %v172 = vld [vmem:[%s171] sm:$0xff]
    %v173 = vld [vmem:[%s171 + $0x8] sm:$0xff]
    %v174 = vld [vmem:[%s171 + $0x10] sm:$0xff]
    %v175 = vld [vmem:[%s171 + $0x18] sm:$0xff]
    %v176 = vld [vmem:[%s171 + $0x20] sm:$0xff]
    %v177 = vld [vmem:[%s171 + $0x28] sm:$0xff]
    %v178 = vld [vmem:[%s171 + $0x30] sm:$0xff]
    %v179 = vld [vmem:[%s171 + $0x38] sm:$0xff]
    %v180 = vld [vmem:[%s171 + $0x40] sm:$0xff]
    %v181 = vld [vmem:[%s171 + $0x48] sm:$0xff]
    %v182 = vld [vmem:[%s171 + $0x50] sm:$0xff]
    %v183 = vld [vmem:[%s171 + $0x58] sm:$0xff]
    %v184 = vld [vmem:[%s171 + $0x60] sm:$0xff]
    %v185 = vld [vmem:[%s171 + $0x68] sm:$0xff]
    %v186 = vld [vmem:[%s171 + $0x70] sm:$0xff]
    %v187 = vld [vmem:[%s171 + $0x78] sm:$0xff]
    %v188 = vld [vmem:[%s171 + $0x80] sm:$0xff]
    %v189 = vld [vmem:[%s171 + $0x88] sm:$0xff]
    %v190 = vld [vmem:[%s171 + $0x90] sm:$0xff]
    %v191 = vld [vmem:[%s171 + $0x98] sm:$0xff]
    %v192 = vld [vmem:[%s171 + $0xa0] sm:$0xff]
    %v193 = vld [vmem:[%s171 + $0xa8] sm:$0xff]
    %v194 = vld [vmem:[%s171 + $0xb0] sm:$0xff]
    %v195 = vld [vmem:[%s171 + $0xb8] sm:$0xff]
    %v196 = vld [vmem:[%s171 + $0xc0] sm:$0xff]
    %v197 = vld [vmem:[%s171 + $0xc8] sm:$0xff]
    %v198 = vld [vmem:[%s171 + $0xd0] sm:$0xff]
    %v199 = vld [vmem:[%s171 + $0xd8] sm:$0xff]
    %v200 = vld [vmem:[%s171 + $0xe0] sm:$0xff]
    %v201 = vld [vmem:[%s171 + $0xe8] sm:$0xff]
    %v202 = vld [vmem:[%s171 + $0xf0] sm:$0xff]
    %v203 = vld [vmem:[%s171 + $0xf8] sm:$0xff]
    %v204 = vld [vmem:[%s171 + $0x100] sm:$0xff]
    %v205 = vld [vmem:[%s171 + $0x108] sm:$0xff]
    %v206 = vld [vmem:[%s171 + $0x110] sm:$0xff]
    %v207 = vld [vmem:[%s171 + $0x118] sm:$0xff]
    %vm208 = vcmask 785408
    %v210 = vsel %vm208, %v46, 0
    %212 = vmatprep.subr.mxu0 0.0
    %213 = vmatpush1.msra.mxu0 0.0
    %214 = vmatprep.subr.mxu0 0.0
    %215 = vmatpush1.msra.mxu0 0.0
    %216 = vmatprep.subr.mxu0 0.0
    %217 = vmatpush1.msra.mxu0 0.0
    %218 = vmatprep.subr.mxu0 0.0
    %219 = vmatpush1.msra.mxu0 0.0
    %220 = vmatprep.subr.mxu0 %v206
    %221 = vmatpush1.msra.mxu0 %v205
    %222 = vmatprep.subr.mxu0 %v203
    %223 = vmatpush1.msra.mxu0 %v202
    %224 = vmatprep.subr.mxu0 %v200
    %225 = vmatpush1.msra.mxu0 %v199
    %226 = vmatprep.subr.mxu0 %v197
    %227 = vmatpush1.msra.mxu0 %v196
    %228 = vmatprep.subr.mxu0 %v194
    %229 = vmatpush1.msra.mxu0 %v193
    %230 = vmatprep.subr.mxu0 %v191
    %231 = vmatpush1.msra.mxu0 %v190
    %232 = vmatprep.subr.mxu0 %v188
    %233 = vmatpush1.msra.mxu0 %v187
    %234 = vmatprep.subr.mxu0 %v185
    %235 = vmatpush1.msra.mxu0 %v184
    %236 = vmatprep.subr.mxu0 %v182
    %237 = vmatpush1.msra.mxu0 %v181
    %238 = vmatprep.subr.mxu0 %v179
    %239 = vmatpush1.msra.mxu0 %v178
    %240 = vmatprep.subr.mxu0 %v176
    %241 = vmatpush1.msra.mxu0 %v175
    %242 = vmatprep.subr.mxu0 %v173
    %243 = vmatpush1.msra.mxu0 %v172
    %244 = vmatprep.subr.mxu0 0.0
    %245 = vmatpush2.msra.mxu0 0.0
    %246 = vmatprep.subr.mxu0 0.0
    %247 = vmatpush2.msra.mxu0 0.0
    %248 = vmatprep.subr.mxu0 0.0
    %249 = vmatpush2.msra.mxu0 0.0
    %250 = vmatprep.subr.mxu0 0.0
    %251 = vmatpush2.msra.mxu0 0.0
    %252 = vmatprep.subr.mxu0 0.0
    %253 = vmatpush2.msra.mxu0 0.0
    %254 = vmatprep.subr.mxu0 0.0
    %255 = vmatpush2.msra.mxu0 0.0
    %256 = vmatprep.subr.mxu0 0.0
    %257 = vmatpush2.msra.mxu0 0.0
    %258 = vmatprep.subr.mxu0 0.0
    %259 = vmatpush2.msra.mxu0 0.0
    %260 = vmatprep.subr.mxu0 0.0
    %261 = vmatpush2.msra.mxu0 0.0
    %262 = vmatprep.subr.mxu0 0.0
    %263 = vmatpush2.msra.mxu0 0.0
    %264 = vmatprep.subr.mxu0 0.0
    %265 = vmatpush2.msra.mxu0 0.0
    %266 = vmatprep.subr.mxu0 0.0
    %267 = vmatpush2.msra.mxu0 0.0
    %268 = vmatprep.subr.mxu0 0.0
    %269 = vmatpush2.msra.mxu0 0.0
    %270 = vmatprep.subr.mxu0 0.0
    %271 = vmatpush2.msra.mxu0 0.0
    %272 = vmatprep.subr.mxu0 0.0
    %273 = vmatpush2.msra.mxu0 0.0
    %274 = vmatprep.subr.mxu0 0.0
    %275 = vmatpush2.msra.mxu0 0.0
    %276 = vmatprep.mubr.f32.mxu0 0.0
    %277 = vmatmul.mubr.f32.gmra.mxu0 %v210
    %v278 = vpop.f32.mrf.mxu0
    %v279 = vadd.f32 0.0, %v278
    %v280 = vpop.f32.mrf.mxu0
    %v281 = vadd.f32 0.0, %v280
    %282 = vdwg.mxu0
    %283 = vmatprep.subr.mxu0 0.0
    %284 = vmatpush1.msra.mxu0 0.0
    %285 = vmatprep.subr.mxu0 0.0
    %286 = vmatpush1.msra.mxu0 0.0
    %287 = vmatprep.subr.mxu0 0.0
    %288 = vmatpush1.msra.mxu0 0.0
    %289 = vmatprep.subr.mxu0 0.0
    %290 = vmatpush1.msra.mxu0 0.0
    %291 = vmatprep.subr.mxu0 0.0
    %292 = vmatpush1.msra.mxu0 %v207
    %293 = vmatprep.subr.mxu0 0.0
    %294 = vmatpush1.msra.mxu0 %v204
    %295 = vmatprep.subr.mxu0 0.0
    %296 = vmatpush1.msra.mxu0 %v201
    %297 = vmatprep.subr.mxu0 0.0
    %298 = vmatpush1.msra.mxu0 %v198
    %299 = vmatprep.subr.mxu0 0.0
    %300 = vmatpush1.msra.mxu0 %v195
    %301 = vmatprep.subr.mxu0 0.0
    %302 = vmatpush1.msra.mxu0 %v192
    %303 = vmatprep.subr.mxu0 0.0
    %304 = vmatpush1.msra.mxu0 %v189
    %305 = vmatprep.subr.mxu0 0.0
    %306 = vmatpush1.msra.mxu0 %v186
    %307 = vmatprep.subr.mxu0 0.0
    %308 = vmatpush1.msra.mxu0 %v183
    %309 = vmatprep.subr.mxu0 0.0
    %310 = vmatpush1.msra.mxu0 %v180
    %311 = vmatprep.subr.mxu0 0.0
    %312 = vmatpush1.msra.mxu0 %v177
    %313 = vmatprep.subr.mxu0 0.0
    %314 = vmatpush1.msra.mxu0 %v174
    %315 = vmatprep.subr.mxu0 0.0
    %316 = vmatpush2.msra.mxu0 0.0
    %317 = vmatprep.subr.mxu0 0.0
    %318 = vmatpush2.msra.mxu0 0.0
    %319 = vmatprep.subr.mxu0 0.0
    %320 = vmatpush2.msra.mxu0 0.0
    %321 = vmatprep.subr.mxu0 0.0
    %322 = vmatpush2.msra.mxu0 0.0
    %323 = vmatprep.subr.mxu0 0.0
    %324 = vmatpush2.msra.mxu0 0.0
    %325 = vmatprep.subr.mxu0 0.0
    %326 = vmatpush2.msra.mxu0 0.0
    %327 = vmatprep.subr.mxu0 0.0
    %328 = vmatpush2.msra.mxu0 0.0
    %329 = vmatprep.subr.mxu0 0.0
    %330 = vmatpush2.msra.mxu0 0.0
    %331 = vmatprep.subr.mxu0 0.0
    %332 = vmatpush2.msra.mxu0 0.0
    %333 = vmatprep.subr.mxu0 0.0
    %334 = vmatpush2.msra.mxu0 0.0
    %335 = vmatprep.subr.mxu0 0.0
    %336 = vmatpush2.msra.mxu0 0.0
    %337 = vmatprep.subr.mxu0 0.0
    %338 = vmatpush2.msra.mxu0 0.0
    %339 = vmatprep.subr.mxu0 0.0
    %340 = vmatpush2.msra.mxu0 0.0
    %341 = vmatprep.subr.mxu0 0.0
    %342 = vmatpush2.msra.mxu0 0.0
    %343 = vmatprep.subr.mxu0 0.0
    %344 = vmatpush2.msra.mxu0 0.0
    %345 = vmatprep.subr.mxu0 0.0
    %346 = vmatpush2.msra.mxu0 0.0
    %347 = vmatprep.mubr.f32.mxu0 0.0
    %348 = vmatmul.mubr.f32.gmra.mxu0 %v210
    %v349 = vpop.f32.mrf.mxu0
    %v350 = vadd.f32 0.0, %v349
    %v351 = vpop.f32.mrf.mxu0
    %352 = vdwg.mxu0
    %v354 = vsel %vm208, %v134, 0
    %356 = vmatprep.subr.mxu0 0.0
    %357 = vmatpush1.msra.mxu0 0.0
    %358 = vmatprep.subr.mxu0 0.0
    %359 = vmatpush1.msra.mxu0 0.0
    %360 = vmatprep.subr.mxu0 0.0
    %361 = vmatpush1.msra.mxu0 0.0
    %362 = vmatprep.subr.mxu0 0.0
    %363 = vmatpush1.msra.mxu0 0.0
    %364 = vmatprep.subr.mxu0 %v169
    %365 = vmatpush1.msra.mxu0 %v168
    %366 = vmatprep.subr.mxu0 %v166
    %367 = vmatpush1.msra.mxu0 %v165
    %368 = vmatprep.subr.mxu0 %v163
    %369 = vmatpush1.msra.mxu0 %v162
    %370 = vmatprep.subr.mxu0 %v160
    %371 = vmatpush1.msra.mxu0 %v159
    %372 = vmatprep.subr.mxu0 %v157
    %373 = vmatpush1.msra.mxu0 %v156
    %374 = vmatprep.subr.mxu0 %v154
    %375 = vmatpush1.msra.mxu0 %v153
    %376 = vmatprep.subr.mxu0 %v151
    %377 = vmatpush1.msra.mxu0 %v150
    %378 = vmatprep.subr.mxu0 %v148
    %379 = vmatpush1.msra.mxu0 %v147
    %380 = vmatprep.subr.mxu0 %v145
    %381 = vmatpush1.msra.mxu0 %v144
    %382 = vmatprep.subr.mxu0 %v142
    %383 = vmatpush1.msra.mxu0 %v141
    %384 = vmatprep.subr.mxu0 %v139
    %385 = vmatpush1.msra.mxu0 %v138
    %386 = vmatprep.subr.mxu0 %v136
    %387 = vmatpush1.msra.mxu0 %v135
    %388 = vmatprep.subr.mxu0 0.0
    %389 = vmatpush2.msra.mxu0 0.0
    %390 = vmatprep.subr.mxu0 0.0
    %391 = vmatpush2.msra.mxu0 0.0
    %392 = vmatprep.subr.mxu0 0.0
    %393 = vmatpush2.msra.mxu0 0.0
    %394 = vmatprep.subr.mxu0 0.0
    %395 = vmatpush2.msra.mxu0 0.0
    %396 = vmatprep.subr.mxu0 0.0
    %397 = vmatpush2.msra.mxu0 0.0
    %398 = vmatprep.subr.mxu0 0.0
    %399 = vmatpush2.msra.mxu0 0.0
    %400 = vmatprep.subr.mxu0 0.0
    %401 = vmatpush2.msra.mxu0 0.0
    %402 = vmatprep.subr.mxu0 0.0
    %403 = vmatpush2.msra.mxu0 0.0
    %404 = vmatprep.subr.mxu0 0.0
    %405 = vmatpush2.msra.mxu0 0.0
    %406 = vmatprep.subr.mxu0 0.0
    %407 = vmatpush2.msra.mxu0 0.0
    %408 = vmatprep.subr.mxu0 0.0
    %409 = vmatpush2.msra.mxu0 0.0
    %410 = vmatprep.subr.mxu0 0.0
    %411 = vmatpush2.msra.mxu0 0.0
    %412 = vmatprep.subr.mxu0 0.0
    %413 = vmatpush2.msra.mxu0 0.0
    %414 = vmatprep.subr.mxu0 0.0
    %415 = vmatpush2.msra.mxu0 0.0
    %416 = vmatprep.subr.mxu0 0.0
    %417 = vmatpush2.msra.mxu0 0.0
    %418 = vmatprep.subr.mxu0 0.0
    %419 = vmatpush2.msra.mxu0 0.0
    %420 = vmatprep.mubr.f32.mxu0 0.0
    %421 = vmatmul.mubr.f32.gmra.mxu0 %v354
    %v422 = vpop.f32.mrf.mxu0
    %v423 = vadd.f32 %v279, %v422
    %v424 = vpop.f32.mrf.mxu0
    %v425 = vadd.f32 %v281, %v424
    %426 = vdwg.mxu0
    %427 = vmatprep.subr.mxu0 0.0
    %428 = vmatpush1.msra.mxu0 0.0
    %429 = vmatprep.subr.mxu0 0.0
    %430 = vmatpush1.msra.mxu0 0.0
    %431 = vmatprep.subr.mxu0 0.0
    %432 = vmatpush1.msra.mxu0 0.0
    %433 = vmatprep.subr.mxu0 0.0
    %434 = vmatpush1.msra.mxu0 0.0
    %435 = vmatprep.subr.mxu0 0.0
    %436 = vmatpush1.msra.mxu0 %v170
    %437 = vmatprep.subr.mxu0 0.0
    %438 = vmatpush1.msra.mxu0 %v167
    %439 = vmatprep.subr.mxu0 0.0
    %440 = vmatpush1.msra.mxu0 %v164
    %441 = vmatprep.subr.mxu0 0.0
    %442 = vmatpush1.msra.mxu0 %v161
    %443 = vmatprep.subr.mxu0 0.0
    %444 = vmatpush1.msra.mxu0 %v158
    %445 = vmatprep.subr.mxu0 0.0
    %446 = vmatpush1.msra.mxu0 %v155
    %447 = vmatprep.subr.mxu0 0.0
    %448 = vmatpush1.msra.mxu0 %v152
    %449 = vmatprep.subr.mxu0 0.0
    %450 = vmatpush1.msra.mxu0 %v149
    %451 = vmatprep.subr.mxu0 0.0
    %452 = vmatpush1.msra.mxu0 %v146
    %453 = vmatprep.subr.mxu0 0.0
    %454 = vmatpush1.msra.mxu0 %v143
    %455 = vmatprep.subr.mxu0 0.0
    %456 = vmatpush1.msra.mxu0 %v140
    %457 = vmatprep.subr.mxu0 0.0
    %458 = vmatpush1.msra.mxu0 %v137
    %459 = vmatprep.subr.mxu0 0.0
    %460 = vmatpush2.msra.mxu0 0.0
    %461 = vmatprep.subr.mxu0 0.0
    %462 = vmatpush2.msra.mxu0 0.0
    %463 = vmatprep.subr.mxu0 0.0
    %464 = vmatpush2.msra.mxu0 0.0
    %465 = vmatprep.subr.mxu0 0.0
    %466 = vmatpush2.msra.mxu0 0.0
    %467 = vmatprep.subr.mxu0 0.0
    %468 = vmatpush2.msra.mxu0 0.0
    %469 = vmatprep.subr.mxu0 0.0
    %470 = vmatpush2.msra.mxu0 0.0
    %471 = vmatprep.subr.mxu0 0.0
    %472 = vmatpush2.msra.mxu0 0.0
    %473 = vmatprep.subr.mxu0 0.0
    %474 = vmatpush2.msra.mxu0 0.0
    %475 = vmatprep.subr.mxu0 0.0
    %476 = vmatpush2.msra.mxu0 0.0
    %477 = vmatprep.subr.mxu0 0.0
    %478 = vmatpush2.msra.mxu0 0.0
    %479 = vmatprep.subr.mxu0 0.0
    %480 = vmatpush2.msra.mxu0 0.0
    %481 = vmatprep.subr.mxu0 0.0
    %482 = vmatpush2.msra.mxu0 0.0
    %483 = vmatprep.subr.mxu0 0.0
    %484 = vmatpush2.msra.mxu0 0.0
    %485 = vmatprep.subr.mxu0 0.0
    %486 = vmatpush2.msra.mxu0 0.0
    %487 = vmatprep.subr.mxu0 0.0
    %488 = vmatpush2.msra.mxu0 0.0
    %489 = vmatprep.subr.mxu0 0.0
    %490 = vmatpush2.msra.mxu0 0.0
    %491 = vmatprep.mubr.f32.mxu0 0.0
    %492 = vmatmul.mubr.f32.gmra.mxu0 %v354
    %v493 = vpop.f32.mrf.mxu0
    %v494 = vadd.f32 %v350, %v493
    %v495 = vpop.f32.mrf.mxu0
    %496 = vdwg.mxu0
    %v497 = vld [vmem:[%s5] sm:$0x7]
    %v499 = vlaneseq
    %v500 = vshrl.u32 %v499, 7
    %v501 = vsub.s32 0, %v500
    %v502 = vrot.slane %v497, %v501
    %v503 = vlaneseq
    %v504 = vshrl.u32 %v503, 7
    %v505 = vsub.s32 1, %v504
    %v506 = vrot.slane %v497, %v505
    %v507 = vlaneseq
    %v508 = vshrl.u32 %v507, 7
    %v509 = vsub.s32 2, %v508
    %v510 = vrot.slane %v497, %v509
    %v514 = vadd.f32 %v423, %v502
    %v515 = vadd.f32 %v425, %v506
    %v516 = vadd.f32 %v494, %v510
    %v517 = vxor.u32 %v514, 2147483648
    %v518 = vmul.f32 %v517, 1.442695
    %v519 = vpow.pop %v518
    %v520 = vadd.f32 %v519, 1.0
    %v521 = vrcp.pop %v520
    %v522 = vmul.f32 1.0, %v521
    %v523 = vxor.u32 %v515, 2147483648
    %v524 = vmul.f32 %v523, 1.442695
    %v525 = vpow.pop %v524
    %v526 = vadd.f32 %v525, 1.0
    %v527 = vrcp.pop %v526
    %v528 = vmul.f32 1.0, %v527
    %530 = vrot.lane.b32.xlu0 %v516, 96
    %v531 = vpop.permute.xlu0 %530
    %v533 = vmul.f32 %v522, %v531
    %535 = vrot.lane.b32.xlu0 %v533, 64
    %v536 = vpop.permute.xlu0 %535
    %v538 = vadd.f32 %v515, %v536
    %v539 = vadd.f32 %v516, %v536
    %v540 = vtanh.pop %v538
    %v541 = vtanh.pop %v539
    %v542 = vsub.f32 1.0, %v522
    %v543 = vsub.f32 1.0, %v528
    %546 = vrot.lane.b32.xlu0 %v540, 32
    %v547 = vpop.permute.xlu0 %546
    %548 = vrot.lane.b32.xlu0 %v541, 32
    %v549 = vpop.permute.xlu0 %548
    %vm550 = vcmask 261120
    %v551 = vsel %vm550, %v547, %v549
    %v554 = vmul.f32 %v542, %v547
    %v555 = vmul.f32 %v543, %v551
    %556 = vrot.lane.b32.xlu0 %v46, 96
    %v557 = vpop.permute.xlu0 %556
    %v559 = vmul.f32 %v522, %v557
    %v560 = vmul.f32 %v528, %v557
    %v561 = vadd.f32 %v554, %v559
    %v562 = vadd.f32 %v555, %v560
    %v563 = vld [vmem:[%s6] sm:$0xff]
    %v564 = vld [vmem:[%s6 + $0x8] sm:$0xff]
    %v565 = vld [vmem:[%s6 + $0x10] sm:$0xff]
    %v566 = vld [vmem:[%s6 + $0x18] sm:$0xff]
    %v567 = vld [vmem:[%s6 + $0x20] sm:$0xff]
    %v568 = vld [vmem:[%s6 + $0x28] sm:$0xff]
    %v569 = vld [vmem:[%s6 + $0x30] sm:$0xff]
    %v570 = vld [vmem:[%s6 + $0x38] sm:$0xff]
    %v571 = vld [vmem:[%s6 + $0x40] sm:$0xff]
    %v572 = vld [vmem:[%s6 + $0x48] sm:$0xff]
    %v573 = vld [vmem:[%s6 + $0x50] sm:$0xff]
    %v574 = vld [vmem:[%s6 + $0x58] sm:$0xff]
    %v575 = vld [vmem:[%s7] sm:$0x1]
    %v577 = vlaneseq
    %v578 = vshrl.u32 %v577, 7
    %v579 = vsub.s32 0, %v578
    %v580 = vrot.slane %v575, %v579
    %584 = vrot.lane.b32.xlu0 %v561, 32
    %v585 = vpop.permute.xlu0 %584
    %586 = vrot.lane.b32.xlu0 %v562, 32
    %v587 = vpop.permute.xlu0 %586
    %v588 = vsel %vm550, %v585, %v587
    %v589 = vsel %vm208, %v588, 0
    %591 = vmatprep.subr.mxu0 0.0
    %592 = vmatpush1.msra.mxu0 0.0
    %593 = vmatprep.subr.mxu0 0.0
    %594 = vmatpush1.msra.mxu0 0.0
    %595 = vmatprep.subr.mxu0 0.0
    %596 = vmatpush1.msra.mxu0 0.0
    %597 = vmatprep.subr.mxu0 0.0
    %598 = vmatpush1.msra.mxu0 0.0
    %599 = vmatprep.subr.mxu0 0.0
    %600 = vmatpush1.msra.mxu0 %v574
    %601 = vmatprep.subr.mxu0 0.0
    %602 = vmatpush1.msra.mxu0 %v573
    %603 = vmatprep.subr.mxu0 0.0
    %604 = vmatpush1.msra.mxu0 %v572
    %605 = vmatprep.subr.mxu0 0.0
    %606 = vmatpush1.msra.mxu0 %v571
    %607 = vmatprep.subr.mxu0 0.0
    %608 = vmatpush1.msra.mxu0 %v570
    %609 = vmatprep.subr.mxu0 0.0
    %610 = vmatpush1.msra.mxu0 %v569
    %611 = vmatprep.subr.mxu0 0.0
    %612 = vmatpush1.msra.mxu0 %v568
    %613 = vmatprep.subr.mxu0 0.0
    %614 = vmatpush1.msra.mxu0 %v567
    %615 = vmatprep.subr.mxu0 0.0
    %616 = vmatpush1.msra.mxu0 %v566
    %617 = vmatprep.subr.mxu0 0.0
    %618 = vmatpush1.msra.mxu0 %v565
    %619 = vmatprep.subr.mxu0 0.0
    %620 = vmatpush1.msra.mxu0 %v564
    %621 = vmatprep.subr.mxu0 0.0
    %622 = vmatpush1.msra.mxu0 %v563
    %623 = vmatprep.subr.mxu0 0.0
    %624 = vmatpush2.msra.mxu0 0.0
    %625 = vmatprep.subr.mxu0 0.0
    %626 = vmatpush2.msra.mxu0 0.0
    %627 = vmatprep.subr.mxu0 0.0
    %628 = vmatpush2.msra.mxu0 0.0
    %629 = vmatprep.subr.mxu0 0.0
    %630 = vmatpush2.msra.mxu0 0.0
    %631 = vmatprep.subr.mxu0 0.0
    %632 = vmatpush2.msra.mxu0 0.0
    %633 = vmatprep.subr.mxu0 0.0
    %634 = vmatpush2.msra.mxu0 0.0
    %635 = vmatprep.subr.mxu0 0.0
    %636 = vmatpush2.msra.mxu0 0.0
    %637 = vmatprep.subr.mxu0 0.0
    %638 = vmatpush2.msra.mxu0 0.0
    %639 = vmatprep.subr.mxu0 0.0
    %640 = vmatpush2.msra.mxu0 0.0
    %641 = vmatprep.subr.mxu0 0.0
    %642 = vmatpush2.msra.mxu0 0.0
    %643 = vmatprep.subr.mxu0 0.0
    %644 = vmatpush2.msra.mxu0 0.0
    %645 = vmatprep.subr.mxu0 0.0
    %646 = vmatpush2.msra.mxu0 0.0
    %647 = vmatprep.subr.mxu0 0.0
    %648 = vmatpush2.msra.mxu0 0.0
    %649 = vmatprep.subr.mxu0 0.0
    %650 = vmatpush2.msra.mxu0 0.0
    %651 = vmatprep.subr.mxu0 0.0
    %652 = vmatpush2.msra.mxu0 0.0
    %653 = vmatprep.subr.mxu0 0.0
    %654 = vmatpush2.msra.mxu0 0.0
    %655 = vmatprep.mubr.f32.mxu0 0.0
    %656 = vmatmul.mubr.f32.gmra.mxu0 %v589
    %v657 = vpop.f32.mrf.mxu0
    %v658 = vadd.f32 %v580, %v657
    %v659 = vpop.f32.mrf.mxu0
    %660 = vdwg.mxu0
    %vm661 = vcmask 189440
    %662 = vst.msk [vmem:[%s8] sm:$0x3] %vm661, %v658
    %vm664 = vcmask 779264
    %665 = vst.msk [vmem:[%s9] sm:$0x3] %vm664, %v588
    // Predicated region
    $region38: #{rnn_ns_forward.1} parent=1 // pred_check
      _
    $region39: #{rnn_ns_forward.1} parent=1 // pred_check_branch
      %667 = sbr.rel (0) target = $region41
    $region40: #{rnn_ns_forward.1} parent=1 // pred_region
      _
    $region41: #{rnn_ns_forward.1} parent=1 // pred_fallthru
      _
    // Predicated region
    $region42: #{rnn_ns_forward.1} parent=1 // pred_check
      _
    $region43: #{rnn_ns_forward.1} parent=1 // pred_check_branch
      %669 = sbr.rel (0) target = $region45
    $region44: #{rnn_ns_forward.1} parent=1 // pred_region
      _
    $region45: #{rnn_ns_forward.1} parent=1 // pred_fallthru
      _
    // Predicated region
    $region46: #{rnn_ns_forward.1} parent=1 // pred_check
      _
    $region47: #{rnn_ns_forward.1} parent=1 // pred_check_branch
      %671 = sbr.rel (0) target = $region49
    $region48: #{rnn_ns_forward.1} parent=1 // pred_region
      _
    $region49: #{rnn_ns_forward.1} parent=1 // pred_fallthru
      _
    // Predicated region
    $region50: #{rnn_ns_forward.1} parent=1 // pred_check
      _
    $region51: #{rnn_ns_forward.1} parent=1 // pred_check_branch
      %673 = sbr.rel (0) target = $region53
    $region52: #{rnn_ns_forward.1} parent=1 // pred_region
      _
    $region53: #{rnn_ns_forward.1} parent=1 // pred_fallthru
      _
    %674 = vsyncpa [#allocation3], 1

</llo_original>
